<compile_context>
chip_gen: v7x
topology: tpu7x:2x2x1
jax: 0.10.0
libtpu: 0.0.40
codegen_flags: <defaults>
</compile_context>

<pallas_src>
import functools

import jax
import jax.numpy as jnp
from jax.experimental import pallas as pl
from jax.experimental.pallas import tpu as pltpu


def _round_up(n, m):
    return ((n + m - 1) // m) * m


def _club_forward_kernel(x_ref, y_ref, yp_ref,
                         w1_ref, b1_ref, w2_ref, b2_ref,
                         o_ref, *, n_valid_rows):
    """One batch tile: fused 2-matmul MLP pair + elementwise tail, reduced to
    a single per-tile partial sum (broadcast into one lane-dense output tile)."""
    yw = y_ref.shape[-1]                       # k * y_dim (packed width)

    # Layer 1: p_mu / p_logvar first Linears fused (k-sample block-diagonal).
    x = x_ref[...].astype(w1_ref.dtype)
    h = jnp.dot(x, w1_ref[...], preferred_element_type=jnp.float32) + b1_ref[...]
    h = jnp.maximum(h, 0.0)                    # [tn, k*2h]

    # Layer 2: packed block-diagonal weight -> [mu | logvar_pre] (k samples each).
    o2 = jnp.dot(h.astype(w2_ref.dtype), w2_ref[...],
                 preferred_element_type=jnp.float32) + b2_ref[...]    # [tn, 2*k*y_dim]
    mu = o2[:, :yw]
    logvar = jnp.tanh(o2[:, yw:])

    y = y_ref[...].astype(jnp.float32)
    yp = yp_ref[...].astype(jnp.float32)
    # positive - negative == ((mu - yp)^2 - (mu - y)^2) * exp(-logvar)
    #                     == (y - yp) * (2*mu - y - yp) * exp(-logvar)
    diff = (y - yp) * (2.0 * mu - y - yp) * jnp.exp(-logvar)          # [tn, k*y_dim]

    if n_valid_rows is not None:
        # Ragged last tile: rows past the end of the array hold garbage; mask them.
        tn = diff.shape[0]
        rows = jax.lax.broadcasted_iota(jnp.int32, diff.shape, 0)
        diff = jnp.where(pl.program_id(0) * tn + rows < n_valid_rows, diff, 0.0)

    # One partial sum per grid step, broadcast into a full (1, 8, 128) tile so
    # the store is a single unmasked, lane-dense vreg write.
    o_ref[...] = jnp.broadcast_to(jnp.sum(diff), o_ref.shape)


def _choose_pack_factor(n, x_dim, y_dim, hidden_size):
    """Largest k dividing n such that packed feature widths stay ~128 lanes."""
    widest = max(x_dim, 2 * y_dim, hidden_size)
    k = max(1, 128 // widest)
    while k > 1 and n % k != 0:
        k -= 1
    return k


def pack_params(params, k=1, mxu_dtype=jnp.float32):
    """Pack the 8 Linear params into 4 slabs, k-sample block-diagonal.

    Layer-1 weight : [k*x_dim, k*2h]   block-diag copies of [w1_mu | w1_logvar]
    Layer-2 weight : [k*2h, 2*k*y_dim] arranged so one matmul yields
                     [mu(samples 0..k-1) | logvar(samples 0..k-1)].
    Done once, outside the forward.  mxu_dtype=jnp.float32 matches the PyTorch
    module's numerics; jnp.bfloat16 trades accuracy for MXU throughput.
    """
    (w1m, b1m, w2m, b2m, w1v, b1v, w2v, b2v) = params
    x_dim, h = w1m.shape
    y_dim = w2m.shape[1]

    w1c = jnp.concatenate([w1m, w1v], axis=1)                    # [x_dim, 2h]
    b1c = jnp.concatenate([b1m, b1v], axis=1)                    # [1, 2h]
    w1p = jnp.zeros((k * x_dim, k * 2 * h), jnp.float32)
    w2p = jnp.zeros((k * 2 * h, 2 * k * y_dim), jnp.float32)
    for s in range(k):
        w1p = w1p.at[s * x_dim:(s + 1) * x_dim,
                     s * 2 * h:(s + 1) * 2 * h].set(w1c)
        w2p = w2p.at[s * 2 * h:s * 2 * h + h,
                     s * y_dim:(s + 1) * y_dim].set(w2m)
        w2p = w2p.at[s * 2 * h + h:(s + 1) * 2 * h,
                     k * y_dim + s * y_dim:k * y_dim + (s + 1) * y_dim].set(w2v)
    b1p = jnp.tile(b1c, (1, k))                                  # [1, k*2h]
    b2p = jnp.concatenate([jnp.tile(b2m, (1, k)),
                           jnp.tile(b2v, (1, k))], axis=1)       # [1, 2*k*y_dim]
    return (w1p.astype(mxu_dtype), b1p.astype(jnp.float32),
            w2p.astype(mxu_dtype), b2p.astype(jnp.float32))


def club_sample_forward(x, y, y_perm, packed, *, block_n=4096):
    """CLUBSample.forward. Returns a scalar f32 (the MI upper bound)."""
    w1p, b1p, w2p, b2p = packed
    n, x_dim = x.shape
    y_dim = y.shape[1]
    k = w1p.shape[0] // x_dim
    assert n % k == 0, "pack factor must divide the batch size"
    n_rows = n // k

    # Zero-copy lane packing: k consecutive samples share one contiguous row.
    xk = x.reshape(n_rows, k * x_dim)
    yk = y.reshape(n_rows, k * y_dim)
    ypk = y_perm.reshape(n_rows, k * y_dim)

    # Batch tile: big enough that per-step DMA dominates the ~0.35us grid-step
    # overhead, but always >=2 grid steps when possible (v7x 2-TC + pipelining).
    if n_rows > 8:
        tn = min(block_n, _round_up(pl.cdiv(n_rows, 2), 8))
    else:
        tn = n_rows
    grid = pl.cdiv(n_rows, tn)
    n_valid_rows = None if n_rows % tn == 0 else n_rows   # mask only when ragged

    kernel = functools.partial(_club_forward_kernel, n_valid_rows=n_valid_rows)
    partials = pl.pallas_call(
        kernel,
        out_shape=jax.ShapeDtypeStruct((grid, 8, 128), jnp.float32),
        grid_spec=pltpu.PrefetchScalarGridSpec(
            num_scalar_prefetch=0,
            grid=(grid,),
            in_specs=[
                # batch-tiled packed activations (double-buffered by Pallas)
                pl.BlockSpec((tn, k * x_dim), lambda i: (i, 0)),
                pl.BlockSpec((tn, k * y_dim), lambda i: (i, 0)),
                pl.BlockSpec((tn, k * y_dim), lambda i: (i, 0)),
                # VMEM-resident packed weights/biases (constant block index)
                pl.BlockSpec(w1p.shape, lambda i: (0, 0)),
                pl.BlockSpec(b1p.shape, lambda i: (0, 0)),
                pl.BlockSpec(w2p.shape, lambda i: (0, 0)),
                pl.BlockSpec(b2p.shape, lambda i: (0, 0)),
            ],
            # one lane-dense partial-sum tile per grid step
            out_specs=pl.BlockSpec((1, 8, 128), lambda i: (i, 0, 0)),
        ),
        compiler_params=pltpu.CompilerParams(
            dimension_semantics=("parallel",),
            vmem_limit_bytes=32 * 1024 * 1024,
        ),
    )(xk, yk, ypk, w1p, b1p, w2p, b2p)

    # Tiny final reduction in the wrapper (keeps the grid axis "parallel").
    return jnp.sum(partials[:, 0, 0]) / (2.0 * n)


def init_params(key, x_dim, y_dim, hidden_size):
    h = hidden_size // 2
    keys = jax.random.split(key, 8)
    scale = 0.1
    w1m = scale * jax.random.normal(keys[0], (x_dim, h), jnp.float32)
    b1m = scale * jax.random.normal(keys[1], (1, h), jnp.float32)
    w2m = scale * jax.random.normal(keys[2], (h, y_dim), jnp.float32)
    b2m = scale * jax.random.normal(keys[3], (1, y_dim), jnp.float32)
    w1v = scale * jax.random.normal(keys[4], (x_dim, h), jnp.float32)
    b1v = scale * jax.random.normal(keys[5], (1, h), jnp.float32)
    w2v = scale * jax.random.normal(keys[6], (h, y_dim), jnp.float32)
    b2v = scale * jax.random.normal(keys[7], (1, y_dim), jnp.float32)
    return (w1m, b1m, w2m, b2m, w1v, b1v, w2v, b2v)


def _reference_forward(x, y, y_perm, params):
    """Pure-JAX f32 reference that mirrors the PyTorch module exactly
    (given the same permutation)."""
    (w1m, b1m, w2m, b2m, w1v, b1v, w2v, b2v) = params
    h_mu = jnp.maximum(x @ w1m + b1m, 0.0)
    mu = h_mu @ w2m + b2m
    h_lv = jnp.maximum(x @ w1v + b1v, 0.0)
    logvar = jnp.tanh(h_lv @ w2v + b2v)
    positive = -(mu - y) ** 2 / jnp.exp(logvar)
    negative = -(mu - y_perm) ** 2 / jnp.exp(logvar)
    return jnp.mean(positive.sum(axis=-1) - negative.sum(axis=-1)) / 2.0


if __name__ == "__main__":
    # Small shapes consistent with the module: x_dim=32, y_dim=16, hidden=32.
    # batch=252 -> pack factor 4 (252 % 4 == 0), 63 packed rows, 2 grid steps
    # with a ragged last tile, so the in-kernel mask path is exercised.
    N, X_DIM, Y_DIM, HIDDEN = 252, 32, 16, 32

    key = jax.random.PRNGKey(0)
    k_x, k_y, k_perm, k_p = jax.random.split(key, 4)

    x = jax.random.normal(k_x, (N, X_DIM), jnp.float32)
    y = jax.random.normal(k_y, (N, Y_DIM), jnp.float32)
    params = init_params(k_p, X_DIM, Y_DIM, HIDDEN)

    # TODO(synk): torch.randperm has no in-kernel equivalent; the permutation
    # is generated with jax.random and the y[perm] gather stays in XLA
    # (per-row 64 B DMA gathers in-kernel would be slower at y_dim=16).
    perm = jax.random.permutation(k_perm, N)
    y_perm = y[perm]

    k_pack = _choose_pack_factor(N, X_DIM, Y_DIM, HIDDEN)
    packed = pack_params(params, k=k_pack)            # f32 MXU operands (torch numerics)

    forward = jax.jit(club_sample_forward, static_argnames=("block_n",))
    out = forward(x, y, y_perm, packed, block_n=4096)
    out = jax.block_until_ready(out)

    ref = _reference_forward(x, y, y_perm, params)
    assert jnp.allclose(out, ref, rtol=2e-3, atol=2e-3), (out, ref)

    print("KERNEL_OK")
</pallas_src>

<mosaic_0001>
module attributes {stable_mosaic.version = 11 : i64} {
  func.func @_club_forward_kernel(%arg0: i32, %arg1: memref<32x128xf32, #tpu.memory_space<vmem>>, %arg2: memref<32x64xf32, #tpu.memory_space<vmem>>, %arg3: memref<32x64xf32, #tpu.memory_space<vmem>>, %arg4: memref<128x128xf32, #tpu.memory_space<vmem>>, %arg5: memref<1x128xf32, #tpu.memory_space<vmem>>, %arg6: memref<128x128xf32, #tpu.memory_space<vmem>>, %arg7: memref<1x128xf32, #tpu.memory_space<vmem>>, %arg8: memref<1x8x128xf32, #tpu.memory_space<vmem>>) attributes {dimension_semantics = [#tpu.dimension_semantics<parallel>], iteration_bounds = array<i64: 2>, scalar_prefetch = 0 : i64, scratch_operands = 0 : i64, tpu.core_type = #tpu.core_type<tc>, window_params = [{transform_indices = @transform_0, window_bounds = array<i64: 32, 128>}, {transform_indices = @transform_1, window_bounds = array<i64: 32, 64>}, {transform_indices = @transform_2, window_bounds = array<i64: 32, 64>}, {pipeline_mode = #tpu.pipeline_mode<synchronous>, transform_indices = @transform_3, window_bounds = array<i64: 128, 128>}, {pipeline_mode = #tpu.pipeline_mode<synchronous>, transform_indices = @transform_4, window_bounds = array<i64: 1, 128>}, {pipeline_mode = #tpu.pipeline_mode<synchronous>, transform_indices = @transform_5, window_bounds = array<i64: 128, 128>}, {pipeline_mode = #tpu.pipeline_mode<synchronous>, transform_indices = @transform_6, window_bounds = array<i64: 1, 128>}, {transform_indices = @transform_7, window_bounds = array<i64: 1, 8, 128>}]} {
    %c0 = arith.constant 0 : index
    %c0_0 = arith.constant 0 : index
    %0 = vector.load %arg1[%c0, %c0_0] : memref<32x128xf32, #tpu.memory_space<vmem>>, vector<32x128xf32>
    %c0_1 = arith.constant 0 : index
    %c0_2 = arith.constant 0 : index
    %1 = vector.load %arg4[%c0_1, %c0_2] : memref<128x128xf32, #tpu.memory_space<vmem>>, vector<128x128xf32>
    %cst = arith.constant dense<0.000000e+00> : vector<32x128xf32>
    %2 = tpu.matmul %0, %1, %cst {dimension_numbers = #tpu.dot_dimension_numbers<[1], [0], [0], [1], [0, 0, 1, 1], [], []>} : vector<32x128xf32>, vector<128x128xf32>, vector<32x128xf32> -> vector<32x128xf32>
    %c0_3 = arith.constant 0 : index
    %c0_4 = arith.constant 0 : index
    %3 = vector.load %arg5[%c0_3, %c0_4] : memref<1x128xf32, #tpu.memory_space<vmem>>, vector<1x128xf32>
    %4 = vector.broadcast %3 : vector<1x128xf32> to vector<32x128xf32>
    %5 = arith.addf %2, %4 : vector<32x128xf32>
    %cst_5 = arith.constant 0.000000e+00 : f32
    %6 = vector.broadcast %cst_5 : f32 to vector<32x128xf32>
    %7 = arith.maximumf %5, %6 : vector<32x128xf32>
    %c0_6 = arith.constant 0 : index
    %c0_7 = arith.constant 0 : index
    %8 = vector.load %arg6[%c0_6, %c0_7] : memref<128x128xf32, #tpu.memory_space<vmem>>, vector<128x128xf32>
    %cst_8 = arith.constant dense<0.000000e+00> : vector<32x128xf32>
    %9 = tpu.matmul %7, %8, %cst_8 {dimension_numbers = #tpu.dot_dimension_numbers<[1], [0], [0], [1], [0, 0, 1, 1], [], []>} : vector<32x128xf32>, vector<128x128xf32>, vector<32x128xf32> -> vector<32x128xf32>
    %c0_9 = arith.constant 0 : index
    %c0_10 = arith.constant 0 : index
    %10 = vector.load %arg7[%c0_9, %c0_10] : memref<1x128xf32, #tpu.memory_space<vmem>>, vector<1x128xf32>
    %11 = vector.broadcast %10 : vector<1x128xf32> to vector<32x128xf32>
    %12 = arith.addf %9, %11 : vector<32x128xf32>
    %13 = vector.extract_strided_slice %12 {offsets = [0, 0], sizes = [32, 64], strides = [1, 1]} : vector<32x128xf32> to vector<32x64xf32>
    %14 = vector.extract_strided_slice %12 {offsets = [0, 64], sizes = [32, 64], strides = [1, 1]} : vector<32x128xf32> to vector<32x64xf32>
    %15 = math.tanh %14 : vector<32x64xf32>
    %c0_11 = arith.constant 0 : index
    %c0_12 = arith.constant 0 : index
    %16 = vector.load %arg2[%c0_11, %c0_12] : memref<32x64xf32, #tpu.memory_space<vmem>>, vector<32x64xf32>
    %c0_13 = arith.constant 0 : index
    %c0_14 = arith.constant 0 : index
    %17 = vector.load %arg3[%c0_13, %c0_14] : memref<32x64xf32, #tpu.memory_space<vmem>>, vector<32x64xf32>
    %18 = arith.subf %16, %17 : vector<32x64xf32>
    %cst_15 = arith.constant 2.000000e+00 : f32
    %19 = vector.broadcast %cst_15 : f32 to vector<32x64xf32>
    %20 = arith.mulf %19, %13 : vector<32x64xf32>
    %21 = arith.subf %20, %16 : vector<32x64xf32>
    %22 = arith.subf %21, %17 : vector<32x64xf32>
    %23 = arith.mulf %18, %22 : vector<32x64xf32>
    %cst_16 = arith.constant 0.000000e+00 : f32
    %24 = vector.broadcast %cst_16 : f32 to vector<32x64xf32>
    %25 = arith.subf %24, %15 : vector<32x64xf32>
    %26 = math.exp %25 : vector<32x64xf32>
    %27 = arith.mulf %23, %26 : vector<32x64xf32>
    %28 = tpu.iota {dimensions = array<i32: 0>} : vector<32x64xi32>
    %c32_i32 = arith.constant 32 : i32
    %29 = arith.muli %arg0, %c32_i32 : i32
    %30 = vector.broadcast %29 : i32 to vector<32x64xi32>
    %31 = arith.addi %30, %28 : vector<32x64xi32>
    %c63_i32 = arith.constant 63 : i32
    %32 = vector.broadcast %c63_i32 : i32 to vector<32x64xi32>
    %33 = arith.cmpi slt, %31, %32 : vector<32x64xi32>
    %cst_17 = arith.constant 0.000000e+00 : f32
    %34 = vector.broadcast %cst_17 : f32 to vector<32x64xf32>
    %35 = arith.select %33, %27, %34 : vector<32x64xi1>, vector<32x64xf32>
    %36 = vector.shape_cast %35 : vector<32x64xf32> to vector<1x32x64xf32>
    %cst_18 = arith.constant dense<0.000000e+00> : vector<1xf32>
    %37 = vector.multi_reduction <add>, %36, %cst_18 [1, 2] : vector<1x32x64xf32> to vector<1xf32>
    %38 = vector.shape_cast %37 : vector<1xf32> to vector<1x1x1xf32>
    %39 = vector.extract %38[0, 0, 0] : f32 from vector<1x1x1xf32>
    %40 = vector.broadcast %39 : f32 to vector<1x8x128xf32>
    %c0_19 = arith.constant 0 : index
    %c0_20 = arith.constant 0 : index
    %c0_21 = arith.constant 0 : index
    %41 = vector.load %arg8[%c0_19, %c0_20, %c0_21] : memref<1x8x128xf32, #tpu.memory_space<vmem>>, vector<1x8x128xf32>
    tpu.vector_store %arg8[%c0_19, %c0_20, %c0_21], %40 {strides = array<i32>} : memref<1x8x128xf32, #tpu.memory_space<vmem>>, vector<1x8x128xf32>,
    return
  }
  func.func @transform_0(%arg0: i32) -> (i32, i32) {
    %c0_i32 = arith.constant 0 : i32
    %c0_i32_0 = arith.constant 0 : i32
    return %arg0, %c0_i32 : i32, i32
  }
  func.func @transform_1(%arg0: i32) -> (i32, i32) {
    %c0_i32 = arith.constant 0 : i32
    %c0_i32_0 = arith.constant 0 : i32
    return %arg0, %c0_i32 : i32, i32
  }
  func.func @transform_2(%arg0: i32) -> (i32, i32) {
    %c0_i32 = arith.constant 0 : i32
    %c0_i32_0 = arith.constant 0 : i32
    return %arg0, %c0_i32 : i32, i32
  }
  func.func @transform_3(%arg0: i32) -> (i32, i32) {
    %c0_i32 = arith.constant 0 : i32
    %c0_i32_0 = arith.constant 0 : i32
    %c0_i32_1 = arith.constant 0 : i32
    return %c0_i32, %c0_i32_0 : i32, i32
  }
  func.func @transform_4(%arg0: i32) -> (i32, i32) {
    %c0_i32 = arith.constant 0 : i32
    %c0_i32_0 = arith.constant 0 : i32
    %c0_i32_1 = arith.constant 0 : i32
    return %c0_i32, %c0_i32_0 : i32, i32
  }
  func.func @transform_5(%arg0: i32) -> (i32, i32) {
    %c0_i32 = arith.constant 0 : i32
    %c0_i32_0 = arith.constant 0 : i32
    %c0_i32_1 = arith.constant 0 : i32
    return %c0_i32, %c0_i32_0 : i32, i32
  }
  func.func @transform_6(%arg0: i32) -> (i32, i32) {
    %c0_i32 = arith.constant 0 : i32
    %c0_i32_0 = arith.constant 0 : i32
    %c0_i32_1 = arith.constant 0 : i32
    return %c0_i32, %c0_i32_0 : i32, i32
  }
  func.func @transform_7(%arg0: i32) -> (i32, i32, i32) {
    %c0_i32 = arith.constant 0 : i32
    %c0_i32_0 = arith.constant 0 : i32
    %c0_i32_1 = arith.constant 0 : i32
    return %arg0, %c0_i32, %c0_i32_0 : i32, i32, i32
  }
}

</mosaic_0001>

<llo_original>
// kernel: club_sample_forward.1
$region0: #{club_sample_forward.1}
  #allocation0 [shape = 'u32[]', space=smem, size = 0x4, offset = 0x4, fixed_abs, tag = 'smem constant byte address 0x4 - core index']
  #allocation1 [shape = 'u32[144,128]{1,0:T(1,128)}', space=vmem, size = 0x12000, scoped, tag = 'internal scratch']
  %s0 = inlined_call_operand.vmem [shape: f32[63,128], index: 0, kind: input, shape index: {}]
  %s1 = inlined_call_operand.vmem [shape: f32[63,64], index: 1, kind: input, shape index: {}]
  %s2 = inlined_call_operand.vmem [shape: f32[63,64], index: 2, kind: input, shape index: {}]
  %s3 = inlined_call_operand.vmem [shape: f32[128,128], index: 3, kind: input, shape index: {}]
  %s4 = inlined_call_operand.vmem [shape: f32[1,128], index: 4, kind: input, shape index: {}]
  %s5 = inlined_call_operand.vmem [shape: f32[128,128], index: 5, kind: input, shape index: {}]
  %s6 = inlined_call_operand.vmem [shape: f32[1,128], index: 6, kind: input, shape index: {}]
  %s7 = inlined_call_operand.vmem [shape: f32[2,8,128], index: 7, kind: output, shape index: {}]
  %s8 = sld [smem:[#allocation0]]
  $region61: #{club_sample_forward.1} parent=0
    _
  %s10 = ssub.s32 1, %s8
  %s11 = scalar_select 0, %s10, %s8
  loop: start=0, step=1, limit=4
  $region2: #{club_sample_forward.1} parent=0 // loop_pre_header
    _
  $region3: #{club_sample_forward.1} parent=0 // loop_header
    %s13 = sphi 0, %s17
    %p14 = scmp.ge.s32.totalorder %s13, 4
    %s23 = sphi 0, %s25
    %s26 = sphi 0, %s23
    %s27 = sphi 0, %s26
    %s43 = sphi 0, %s27
    %s49 = sphi 0, %s51
    %s52 = sphi 0, %s49
    %s53 = sphi 0, %s52
    %s69 = sphi 0, %s53
    %s75 = sphi 0, %s77
    %s78 = sphi 0, %s75
    %s79 = sphi 0, %s78
    %s95 = sphi 0, %s79
    %s99 = sphi 0, %s99
    %s101 = sphi 0, %s99
    %s102 = sphi 0, %s101
    %s116 = sphi 0, %s102
    %s120 = sphi 0, %s120
    %s122 = sphi 0, %s120
    %s123 = sphi 0, %s122
    %s137 = sphi 0, %s123
    %s141 = sphi 0, %s141
    %s143 = sphi 0, %s141
    %s144 = sphi 0, %s143
    %s158 = sphi 0, %s144
    %s162 = sphi 0, %s162
    %s164 = sphi 0, %s162
    %s165 = sphi 0, %s164
    %s179 = sphi 0, %s165
    %s185 = sphi 0, %s187
    %s188 = sphi 0, %s185
    %s189 = sphi 0, %s188
    %s205 = sphi 0, %s189
  $region4: #{club_sample_forward.1} parent=0 // loop_header_branch
    %16 = sbr.rel (%p14) target = $region8
  $region5: #{club_sample_forward.1} parent=0 // loop_body
    %s18 = ssub.s32 %s13, 1
    %s19 = ssub.s32 %s13, 2
    %s20 = sadd.s32 %s13, 1
    %s21 = ssub.s32 %s13, %s20
    %p22 = scmp.eq.s32.totalorder %s21, 0
    %s24 = sadd.s32 %s23, 1
    %s25 = scalar_select %p22, %s23, %s24
    %p28 = pneg %p22
    %p29 = scmp.eq.s32.totalorder %s13, 1
    %p30 = por %p28, %p29
    %p31 = scmp.ne.s32.totalorder %s23, %s26
    %p32 = scmp.eq.s32.totalorder %s13, 0
    %p33 = por %p31, %p32
    %p34 = scmp.ne.s32.totalorder %s23, %s26
    %p35 = scmp.eq.s32.totalorder %s18, 1
    %p36 = por %p34, %p35
    %p37 = scmp.ne.s32.totalorder %s26, %s27
    %p38 = scmp.eq.s32.totalorder %s18, 0
    %p39 = por %p37, %p38
    %p40 = scmp.ne.s32.totalorder %s26, %s27
    %p41 = scmp.eq.s32.totalorder %s19, 1
    %p42 = por %p40, %p41
    %p44 = scmp.ne.s32.totalorder %s27, %s43
    %p45 = scmp.eq.s32.totalorder %s19, 0
    %p46 = por %p44, %p45
    %s47 = ssub.s32 %s13, %s20
    %p48 = scmp.eq.s32.totalorder %s47, 0
    %s50 = sadd.s32 %s49, 1
    %s51 = scalar_select %p48, %s49, %s50
    %p54 = pneg %p48
    %p55 = scmp.eq.s32.totalorder %s13, 1
    %p56 = por %p54, %p55
    %p57 = scmp.ne.s32.totalorder %s49, %s52
    %p58 = scmp.eq.s32.totalorder %s13, 0
    %p59 = por %p57, %p58
    %p60 = scmp.ne.s32.totalorder %s49, %s52
    %p61 = scmp.eq.s32.totalorder %s18, 1
    %p62 = por %p60, %p61
    %p63 = scmp.ne.s32.totalorder %s52, %s53
    %p64 = scmp.eq.s32.totalorder %s18, 0
    %p65 = por %p63, %p64
    %p66 = scmp.ne.s32.totalorder %s52, %s53
    %p67 = scmp.eq.s32.totalorder %s19, 1
    %p68 = por %p66, %p67
    %p70 = scmp.ne.s32.totalorder %s53, %s69
    %p71 = scmp.eq.s32.totalorder %s19, 0
    %p72 = por %p70, %p71
    %s73 = ssub.s32 %s13, %s20
    %p74 = scmp.eq.s32.totalorder %s73, 0
    %s76 = sadd.s32 %s75, 1
    %s77 = scalar_select %p74, %s75, %s76
    %p80 = pneg %p74
    %p81 = scmp.eq.s32.totalorder %s13, 1
    %p82 = por %p80, %p81
    %p83 = scmp.ne.s32.totalorder %s75, %s78
    %p84 = scmp.eq.s32.totalorder %s13, 0
    %p85 = por %p83, %p84
    %p86 = scmp.ne.s32.totalorder %s75, %s78
    %p87 = scmp.eq.s32.totalorder %s18, 1
    %p88 = por %p86, %p87
    %p89 = scmp.ne.s32.totalorder %s78, %s79
    %p90 = scmp.eq.s32.totalorder %s18, 0
    %p91 = por %p89, %p90
    %p92 = scmp.ne.s32.totalorder %s78, %s79
    %p93 = scmp.eq.s32.totalorder %s19, 1
    %p94 = por %p92, %p93
    %p96 = scmp.ne.s32.totalorder %s79, %s95
    %p97 = scmp.eq.s32.totalorder %s19, 0
    %p98 = por %p96, %p97
    %s100 = sadd.s32 %s99, 1
    %p103 = scmp.eq.s32.totalorder %s13, 1
    %p104 = scmp.ne.s32.totalorder %s99, %s101
    %p105 = scmp.eq.s32.totalorder %s13, 0
    %p106 = por %p104, %p105
    %p107 = scmp.ne.s32.totalorder %s99, %s101
    %p108 = scmp.eq.s32.totalorder %s18, 1
    %p109 = por %p107, %p108
    %p110 = scmp.ne.s32.totalorder %s101, %s102
    %p111 = scmp.eq.s32.totalorder %s18, 0
    %p112 = por %p110, %p111
    %p113 = scmp.ne.s32.totalorder %s101, %s102
    %p114 = scmp.eq.s32.totalorder %s19, 1
    %p115 = por %p113, %p114
    %p117 = scmp.ne.s32.totalorder %s102, %s116
    %p118 = scmp.eq.s32.totalorder %s19, 0
    %p119 = por %p117, %p118
    %s121 = sadd.s32 %s120, 1
    %p124 = scmp.eq.s32.totalorder %s13, 1
    %p125 = scmp.ne.s32.totalorder %s120, %s122
    %p126 = scmp.eq.s32.totalorder %s13, 0
    %p127 = por %p125, %p126
    %p128 = scmp.ne.s32.totalorder %s120, %s122
    %p129 = scmp.eq.s32.totalorder %s18, 1
    %p130 = por %p128, %p129
    %p131 = scmp.ne.s32.totalorder %s122, %s123
    %p132 = scmp.eq.s32.totalorder %s18, 0
    %p133 = por %p131, %p132
    %p134 = scmp.ne.s32.totalorder %s122, %s123
    %p135 = scmp.eq.s32.totalorder %s19, 1
    %p136 = por %p134, %p135
    %p138 = scmp.ne.s32.totalorder %s123, %s137
    %p139 = scmp.eq.s32.totalorder %s19, 0
    %p140 = por %p138, %p139
    %s142 = sadd.s32 %s141, 1
    %p145 = scmp.eq.s32.totalorder %s13, 1
    %p146 = scmp.ne.s32.totalorder %s141, %s143
    %p147 = scmp.eq.s32.totalorder %s13, 0
    %p148 = por %p146, %p147
    %p149 = scmp.ne.s32.totalorder %s141, %s143
    %p150 = scmp.eq.s32.totalorder %s18, 1
    %p151 = por %p149, %p150
    %p152 = scmp.ne.s32.totalorder %s143, %s144
    %p153 = scmp.eq.s32.totalorder %s18, 0
    %p154 = por %p152, %p153
    %p155 = scmp.ne.s32.totalorder %s143, %s144
    %p156 = scmp.eq.s32.totalorder %s19, 1
    %p157 = por %p155, %p156
    %p159 = scmp.ne.s32.totalorder %s144, %s158
    %p160 = scmp.eq.s32.totalorder %s19, 0
    %p161 = por %p159, %p160
    %s163 = sadd.s32 %s162, 1
    %p166 = scmp.eq.s32.totalorder %s13, 1
    %p167 = scmp.ne.s32.totalorder %s162, %s164
    %p168 = scmp.eq.s32.totalorder %s13, 0
    %p169 = por %p167, %p168
    %p170 = scmp.ne.s32.totalorder %s162, %s164
    %p171 = scmp.eq.s32.totalorder %s18, 1
    %p172 = por %p170, %p171
    %p173 = scmp.ne.s32.totalorder %s164, %s165
    %p174 = scmp.eq.s32.totalorder %s18, 0
    %p175 = por %p173, %p174
    %p176 = scmp.ne.s32.totalorder %s164, %s165
    %p177 = scmp.eq.s32.totalorder %s19, 1
    %p178 = por %p176, %p177
    %p180 = scmp.ne.s32.totalorder %s165, %s179
    %p181 = scmp.eq.s32.totalorder %s19, 0
    %p182 = por %p180, %p181
    %s183 = ssub.s32 %s13, %s20
    %p184 = scmp.eq.s32.totalorder %s183, 0
    %s186 = sadd.s32 %s185, 1
    %s187 = scalar_select %p184, %s185, %s186
    %p190 = pneg %p184
    %p191 = scmp.eq.s32.totalorder %s13, 1
    %p192 = por %p190, %p191
    %p193 = scmp.ne.s32.totalorder %s185, %s188
    %p194 = scmp.eq.s32.totalorder %s13, 0
    %p195 = por %p193, %p194
    %p196 = scmp.ne.s32.totalorder %s185, %s188
    %p197 = scmp.eq.s32.totalorder %s18, 1
    %p198 = por %p196, %p197
    %p199 = scmp.ne.s32.totalorder %s188, %s189
    %p200 = scmp.eq.s32.totalorder %s18, 0
    %p201 = por %p199, %p200
    %p202 = scmp.ne.s32.totalorder %s188, %s189
    %p203 = scmp.eq.s32.totalorder %s19, 1
    %p204 = por %p202, %p203
    %p206 = scmp.ne.s32.totalorder %s189, %s205
    %p207 = scmp.eq.s32.totalorder %s19, 0
    %p208 = por %p206, %p207
    %p209 = scmp.le.s32.totalorder 1, %s13
    %p210 = scmp.lt.s32.totalorder %s13, 3
    %p211 = pnand %p209, %p210
    %p212 = pneg %p211
    // Predicated region
    $region9: #{club_sample_forward.1} parent=5 // pred_check
      _
    $region10: #{club_sample_forward.1} parent=5 // pred_check_branch
      %214 = sbr.rel (%p211) target = $region12
    $region11: #{club_sample_forward.1} parent=5 // pred_region
      %s215 = ssub.s32 %s13, 1
      // Predicated region
      $region13: #{club_sample_forward.1} parent=11 // pred_check
        %p216 = pneg %p112
      $region14: #{club_sample_forward.1} parent=11 // pred_check_branch
        %218 = sbr.rel (%p216) target = $region16
      $region15: #{club_sample_forward.1} parent=11 // pred_region
        _
      $region16: #{club_sample_forward.1} parent=11 // pred_fallthru
        _
      // Predicated region
      $region17: #{club_sample_forward.1} parent=11 // pred_check
        %p219 = pneg %p133
      $region18: #{club_sample_forward.1} parent=11 // pred_check_branch
        %221 = sbr.rel (%p219) target = $region20
      $region19: #{club_sample_forward.1} parent=11 // pred_region
        _
      $region20: #{club_sample_forward.1} parent=11 // pred_fallthru
        _
      // Predicated region
      $region21: #{club_sample_forward.1} parent=11 // pred_check
        %p222 = pneg %p154
      $region22: #{club_sample_forward.1} parent=11 // pred_check_branch
        %224 = sbr.rel (%p222) target = $region24
      $region23: #{club_sample_forward.1} parent=11 // pred_region
        _
      $region24: #{club_sample_forward.1} parent=11 // pred_fallthru
        _
      // Predicated region
      $region25: #{club_sample_forward.1} parent=11 // pred_check
        %p225 = pneg %p175
      $region26: #{club_sample_forward.1} parent=11 // pred_check_branch
        %227 = sbr.rel (%p225) target = $region28
      $region27: #{club_sample_forward.1} parent=11 // pred_region
        _
      $region28: #{club_sample_forward.1} parent=11 // pred_fallthru
        _
    $region12: #{club_sample_forward.1} parent=5 // pred_fallthru
      _
    %p228 = scmp.lt.s32.totalorder %s13, 2
    // Predicated region
    $region29: #{club_sample_forward.1} parent=5 // pred_check
      %p229 = pneg %p228
    $region30: #{club_sample_forward.1} parent=5 // pred_check_branch
      %231 = sbr.rel (%p229) target = $region32
    $region31: #{club_sample_forward.1} parent=5 // pred_region
      // Predicated region
      $region33: #{club_sample_forward.1} parent=31 // pred_check
        %p232 = pneg %p33
      $region34: #{club_sample_forward.1} parent=31 // pred_check_branch
        %234 = sbr.rel (%p232) target = $region36
      $region35: #{club_sample_forward.1} parent=31 // pred_region
        %s235 = smul.u32 4, %s13
        %p236 = scmp.lt.s32.totalorder %s235, 7
        %s237 = scalar_select %p236, %s235, 7
        %s238 = smul.addr %s237, 8
        %s239 = scalar_lea.vmem %s0, %s238
        %s240 = smul.u32 4, %s13
      $region36: #{club_sample_forward.1} parent=31 // pred_fallthru
        _
      // Predicated region
      $region37: #{club_sample_forward.1} parent=31 // pred_check
        %p241 = pneg %p59
      $region38: #{club_sample_forward.1} parent=31 // pred_check_branch
        %243 = sbr.rel (%p241) target = $region40
      $region39: #{club_sample_forward.1} parent=31 // pred_region
        %s244 = smul.u32 4, %s13
        %p245 = scmp.lt.s32.totalorder %s244, 7
        %s246 = scalar_select %p245, %s244, 7
        %s247 = smul.addr %s246, 8
        %s248 = scalar_lea.vmem %s1, %s247
        %s249 = smul.u32 4, %s13
      $region40: #{club_sample_forward.1} parent=31 // pred_fallthru
        _
      // Predicated region
      $region41: #{club_sample_forward.1} parent=31 // pred_check
        %p250 = pneg %p85
      $region42: #{club_sample_forward.1} parent=31 // pred_check_branch
        %252 = sbr.rel (%p250) target = $region44
      $region43: #{club_sample_forward.1} parent=31 // pred_region
        %s253 = smul.u32 4, %s13
        %p254 = scmp.lt.s32.totalorder %s253, 7
        %s255 = scalar_select %p254, %s253, 7
        %s256 = smul.addr %s255, 8
        %s257 = scalar_lea.vmem %s2, %s256
        %s258 = smul.u32 4, %s13
      $region44: #{club_sample_forward.1} parent=31 // pred_fallthru
        _
    $region32: #{club_sample_forward.1} parent=5 // pred_fallthru
      _
    %p259 = scmp.le.s32.totalorder 1, %s13
    %p260 = scmp.lt.s32.totalorder %s13, 3
    %p261 = pnand %p259, %p260
    %p262 = pneg %p261
    // Predicated region
    $region45: #{club_sample_forward.1} parent=5 // pred_check
      _
    $region46: #{club_sample_forward.1} parent=5 // pred_check_branch
      %264 = sbr.rel (%p261) target = $region48
    $region47: #{club_sample_forward.1} parent=5 // pred_region
      %s265 = ssub.s32 %s13, 1
      %s266 = smul.u32 4, %s18
      %p267 = scmp.lt.s32.totalorder %s266, 7
      %s268 = scalar_select %p267, %s266, 7
      %s269 = smul.addr %s268, 8
      %s270 = scalar_lea.vmem %s0, %s269
      %p271 = pneg %p39
      %p272 = pneg %p36
      %s273 = smul.u32 4, %s18
      %p274 = scmp.lt.s32.totalorder %s273, 7
      %s275 = scalar_select %p274, %s273, 7
      %s276 = smul.addr %s275, 8
      %s277 = scalar_lea.vmem %s1, %s276
      %p278 = pneg %p65
      %p279 = pneg %p62
      %s280 = smul.u32 4, %s18
      %p281 = scmp.lt.s32.totalorder %s280, 7
      %s282 = scalar_select %p281, %s280, 7
      %s283 = smul.addr %s282, 8
      %s284 = scalar_lea.vmem %s2, %s283
      %p285 = pneg %p91
      %p286 = pneg %p88
      %p287 = pneg %p112
      %p288 = pneg %p109
      %p289 = pneg %p133
      %p290 = pneg %p130
      %p291 = pneg %p154
      %p292 = pneg %p151
      %p293 = pneg %p175
      %p294 = pneg %p172
      %p295 = pneg %p201
      %p296 = pneg %p198
      %p297 = scmp.lt.s32.totalorder %s18, 1
      %s298 = scalar_select %p297, %s18, 1
      %s299 = smul.addr %s298, 8
      %s300 = scalar_lea.vmem %s7, %s299
      %s301 = smul.u32 4, %s18
      %p302 = scmp.lt.s32.totalorder %s301, 7
      %s303 = scalar_select %p302, %s301, 7
      %s304 = smul.addr %s303, 8
      %s305 = scalar_lea.vmem %s0, %s304
      %s306 = smul.u32 4, %s18
      %s307 = smul.u32 4, %s18
      %p308 = scmp.lt.s32.totalorder %s307, 7
      %s309 = scalar_select %p308, %s307, 7
      %s310 = smul.addr %s309, 8
      %s311 = scalar_lea.vmem %s1, %s310
      %s312 = smul.u32 4, %s18
      %s313 = smul.u32 4, %s18
      %p314 = scmp.lt.s32.totalorder %s313, 7
      %s315 = scalar_select %p314, %s313, 7
      %s316 = smul.addr %s315, 8
      %s317 = scalar_lea.vmem %s2, %s316
      %s318 = smul.u32 4, %s18
      %p319 = scmp.lt.s32.totalorder %s18, 1
      %s320 = scalar_select %p319, %s18, 1
      %s321 = smul.addr %s320, 8
      %s322 = scalar_lea.vmem %s7, %s321
      %v323 = vld [vmem:[%s305] sm:$0xff]
      %v324 = vld [vmem:[%s305 + $0x8] sm:$0xff]
      %v325 = vld [vmem:[%s305 + $0x10] sm:$0xff]
      %v326 = vld [vmem:[%s305 + $0x18] sm:$0xff]
      %v327 = vld [vmem:[%s3] sm:$0xff]
      %v328 = vld [vmem:[%s3 + $0x8] sm:$0xff]
      %v329 = vld [vmem:[%s3 + $0x10] sm:$0xff]
      %v330 = vld [vmem:[%s3 + $0x18] sm:$0xff]
      %v331 = vld [vmem:[%s3 + $0x20] sm:$0xff]
      %v332 = vld [vmem:[%s3 + $0x28] sm:$0xff]
      %v333 = vld [vmem:[%s3 + $0x30] sm:$0xff]
      %v334 = vld [vmem:[%s3 + $0x38] sm:$0xff]
      %v335 = vld [vmem:[%s3 + $0x40] sm:$0xff]
      %v336 = vld [vmem:[%s3 + $0x48] sm:$0xff]
      %v337 = vld [vmem:[%s3 + $0x50] sm:$0xff]
      %v338 = vld [vmem:[%s3 + $0x58] sm:$0xff]
      %v339 = vld [vmem:[%s3 + $0x60] sm:$0xff]
      %v340 = vld [vmem:[%s3 + $0x68] sm:$0xff]
      %v341 = vld [vmem:[%s3 + $0x70] sm:$0xff]
      %v342 = vld [vmem:[%s3 + $0x78] sm:$0xff]
      %v343 = vld [vmem:[%s4] sm:$0x1]
      %v345 = vlaneseq
      %v346 = vshrl.u32 %v345, 7
      %v347 = vsub.s32 0, %v346
      %v348 = vrot.slane %v343, %v347
      %350 = vmatprep.subr.mxu0 0.0
      %351 = vmatpush1.msra.mxu0 %v327
      %352 = vmatprep.subr.mxu0 0.0
      %353 = vmatpush1.msra.mxu0 %v328
      %354 = vmatprep.subr.mxu0 0.0
      %355 = vmatpush1.msra.mxu0 %v329
      %356 = vmatprep.subr.mxu0 0.0
      %357 = vmatpush1.msra.mxu0 %v330
      %358 = vmatprep.subr.mxu0 0.0
      %359 = vmatpush1.msra.mxu0 %v331
      %360 = vmatprep.subr.mxu0 0.0
      %361 = vmatpush1.msra.mxu0 %v332
      %362 = vmatprep.subr.mxu0 0.0
      %363 = vmatpush1.msra.mxu0 %v333
      %364 = vmatprep.subr.mxu0 0.0
      %365 = vmatpush1.msra.mxu0 %v334
      %366 = vmatprep.subr.mxu0 0.0
      %367 = vmatpush1.msra.mxu0 %v335
      %368 = vmatprep.subr.mxu0 0.0
      %369 = vmatpush1.msra.mxu0 %v336
      %370 = vmatprep.subr.mxu0 0.0
      %371 = vmatpush1.msra.mxu0 %v337
      %372 = vmatprep.subr.mxu0 0.0
      %373 = vmatpush1.msra.mxu0 %v338
      %374 = vmatprep.subr.mxu0 0.0
      %375 = vmatpush1.msra.mxu0 %v339
      %376 = vmatprep.subr.mxu0 0.0
      %377 = vmatpush1.msra.mxu0 %v340
      %378 = vmatprep.subr.mxu0 0.0
      %379 = vmatpush1.msra.mxu0 %v341
      %380 = vmatprep.subr.mxu0 0.0
      %381 = vmatpush1.msra.mxu0 %v342
      %382 = vmatprep.subr.mxu0 0.0
      %383 = vmatpush1.msra.mxu0 0.0
      %384 = vmatprep.subr.mxu0 0.0
      %385 = vmatpush1.msra.mxu0 0.0
      %386 = vmatprep.subr.mxu0 0.0
      %387 = vmatpush1.msra.mxu0 0.0
      %388 = vmatprep.subr.mxu0 0.0
      %389 = vmatpush1.msra.mxu0 0.0
      %390 = vmatprep.subr.mxu0 0.0
      %391 = vmatpush1.msra.mxu0 0.0
      %392 = vmatprep.subr.mxu0 0.0
      %393 = vmatpush1.msra.mxu0 0.0
      %394 = vmatprep.subr.mxu0 0.0
      %395 = vmatpush1.msra.mxu0 0.0
      %396 = vmatprep.subr.mxu0 0.0
      %397 = vmatpush1.msra.mxu0 0.0
      %398 = vmatprep.subr.mxu0 0.0
      %399 = vmatpush1.msra.mxu0 0.0
      %400 = vmatprep.subr.mxu0 0.0
      %401 = vmatpush1.msra.mxu0 0.0
      %402 = vmatprep.subr.mxu0 0.0
      %403 = vmatpush1.msra.mxu0 0.0
      %404 = vmatprep.subr.mxu0 0.0
      %405 = vmatpush1.msra.mxu0 0.0
      %406 = vmatprep.subr.mxu0 0.0
      %407 = vmatpush1.msra.mxu0 0.0
      %408 = vmatprep.subr.mxu0 0.0
      %409 = vmatpush1.msra.mxu0 0.0
      %410 = vmatprep.subr.mxu0 0.0
      %411 = vmatpush1.msra.mxu0 0.0
      %412 = vmatprep.subr.mxu0 0.0
      %413 = vmatpush1.msra.mxu0 0.0
      %414 = vmatprep.mubr.f32.mxu0 0.0
      %415 = vmatmul.mubr.f32.gmra.mrb[0].mxu0 %v323
      %v416 = vpop.f32.mrb[0].mxu0
      %v417 = vadd.f32 %v348, %v416
      %v418 = vpop.f32.mrb[0].mxu0
      %419 = vmatprep.mubr.f32.mxu0 0.0
      %420 = vmatmul.mubr.f32.gmra.mrb[0].mxu0 %v324
      %v421 = vpop.f32.mrb[0].mxu0
      %v422 = vadd.f32 %v348, %v421
      %v423 = vpop.f32.mrb[0].mxu0
      %424 = vmatprep.mubr.f32.mxu0 0.0
      %425 = vmatmul.mubr.f32.gmra.mrb[0].mxu0 %v325
      %v426 = vpop.f32.mrb[0].mxu0
      %v427 = vadd.f32 %v348, %v426
      %v428 = vpop.f32.mrb[0].mxu0
      %429 = vmatprep.mubr.f32.mxu0 0.0
      %430 = vmatmul.mubr.f32.gmra.mrb[0].mxu0 %v326
      %v431 = vpop.f32.mrb[0].mxu0
      %v432 = vadd.f32 %v348, %v431
      %v433 = vpop.f32.mrb[0].mxu0
      %434 = vdwg.mxu0
      %v435 = vmax.f32 %v417, 0.0
      %v436 = vmax.f32 %v422, 0.0
      %v437 = vmax.f32 %v427, 0.0
      %v438 = vmax.f32 %v432, 0.0
      %v439 = vld [vmem:[%s5] sm:$0xff]
      %v440 = vld [vmem:[%s5 + $0x8] sm:$0xff]
      %v441 = vld [vmem:[%s5 + $0x10] sm:$0xff]
      %v442 = vld [vmem:[%s5 + $0x18] sm:$0xff]
      %v443 = vld [vmem:[%s5 + $0x20] sm:$0xff]
      %v444 = vld [vmem:[%s5 + $0x28] sm:$0xff]
      %v445 = vld [vmem:[%s5 + $0x30] sm:$0xff]
      %v446 = vld [vmem:[%s5 + $0x38] sm:$0xff]
      %v447 = vld [vmem:[%s5 + $0x40] sm:$0xff]
      %v448 = vld [vmem:[%s5 + $0x48] sm:$0xff]
      %v449 = vld [vmem:[%s5 + $0x50] sm:$0xff]
      %v450 = vld [vmem:[%s5 + $0x58] sm:$0xff]
      %v451 = vld [vmem:[%s5 + $0x60] sm:$0xff]
      %v452 = vld [vmem:[%s5 + $0x68] sm:$0xff]
      %v453 = vld [vmem:[%s5 + $0x70] sm:$0xff]
      %v454 = vld [vmem:[%s5 + $0x78] sm:$0xff]
      %v455 = vld [vmem:[%s6] sm:$0x1]
      %v457 = vlaneseq
      %v458 = vshrl.u32 %v457, 7
      %v459 = vsub.s32 0, %v458
      %v460 = vrot.slane %v455, %v459
      %462 = vmatprep.subr.mxu0 0.0
      %463 = vmatpush1.msra.mxu0 %v439
      %464 = vmatprep.subr.mxu0 0.0
      %465 = vmatpush1.msra.mxu0 %v440
      %466 = vmatprep.subr.mxu0 0.0
      %467 = vmatpush1.msra.mxu0 %v441
      %468 = vmatprep.subr.mxu0 0.0
      %469 = vmatpush1.msra.mxu0 %v442
      %470 = vmatprep.subr.mxu0 0.0
      %471 = vmatpush1.msra.mxu0 %v443
      %472 = vmatprep.subr.mxu0 0.0
      %473 = vmatpush1.msra.mxu0 %v444
      %474 = vmatprep.subr.mxu0 0.0
      %475 = vmatpush1.msra.mxu0 %v445
      %476 = vmatprep.subr.mxu0 0.0
      %477 = vmatpush1.msra.mxu0 %v446
      %478 = vmatprep.subr.mxu0 0.0
      %479 = vmatpush1.msra.mxu0 %v447
      %480 = vmatprep.subr.mxu0 0.0
      %481 = vmatpush1.msra.mxu0 %v448
      %482 = vmatprep.subr.mxu0 0.0
      %483 = vmatpush1.msra.mxu0 %v449
      %484 = vmatprep.subr.mxu0 0.0
      %485 = vmatpush1.msra.mxu0 %v450
      %486 = vmatprep.subr.mxu0 0.0
      %487 = vmatpush1.msra.mxu0 %v451
      %488 = vmatprep.subr.mxu0 0.0
      %489 = vmatpush1.msra.mxu0 %v452
      %490 = vmatprep.subr.mxu0 0.0
      %491 = vmatpush1.msra.mxu0 %v453
      %492 = vmatprep.subr.mxu0 0.0
      %493 = vmatpush1.msra.mxu0 %v454
      %494 = vmatprep.subr.mxu0 0.0
      %495 = vmatpush1.msra.mxu0 0.0
      %496 = vmatprep.subr.mxu0 0.0
      %497 = vmatpush1.msra.mxu0 0.0
      %498 = vmatprep.subr.mxu0 0.0
      %499 = vmatpush1.msra.mxu0 0.0
      %500 = vmatprep.subr.mxu0 0.0
      %501 = vmatpush1.msra.mxu0 0.0
      %502 = vmatprep.subr.mxu0 0.0
      %503 = vmatpush1.msra.mxu0 0.0
      %504 = vmatprep.subr.mxu0 0.0
      %505 = vmatpush1.msra.mxu0 0.0
      %506 = vmatprep.subr.mxu0 0.0
      %507 = vmatpush1.msra.mxu0 0.0
      %508 = vmatprep.subr.mxu0 0.0
      %509 = vmatpush1.msra.mxu0 0.0
      %510 = vmatprep.subr.mxu0 0.0
      %511 = vmatpush1.msra.mxu0 0.0
      %512 = vmatprep.subr.mxu0 0.0
      %513 = vmatpush1.msra.mxu0 0.0
      %514 = vmatprep.subr.mxu0 0.0
      %515 = vmatpush1.msra.mxu0 0.0
      %516 = vmatprep.subr.mxu0 0.0
      %517 = vmatpush1.msra.mxu0 0.0
      %518 = vmatprep.subr.mxu0 0.0
      %519 = vmatpush1.msra.mxu0 0.0
      %520 = vmatprep.subr.mxu0 0.0
      %521 = vmatpush1.msra.mxu0 0.0
      %522 = vmatprep.subr.mxu0 0.0
      %523 = vmatpush1.msra.mxu0 0.0
      %524 = vmatprep.subr.mxu0 0.0
      %525 = vmatpush1.msra.mxu0 0.0
      %526 = vmatprep.mubr.f32.mxu0 0.0
      %527 = vmatmul.mubr.f32.gmra.mrb[0].mxu0 %v435
      %v528 = vpop.f32.mrb[0].mxu0
      %v529 = vadd.f32 %v460, %v528
      %v530 = vpop.f32.mrb[0].mxu0
      %531 = vmatprep.mubr.f32.mxu0 0.0
      %532 = vmatmul.mubr.f32.gmra.mrb[0].mxu0 %v436
      %v533 = vpop.f32.mrb[0].mxu0
      %v534 = vadd.f32 %v460, %v533
      %v535 = vpop.f32.mrb[0].mxu0
      %536 = vmatprep.mubr.f32.mxu0 0.0
      %537 = vmatmul.mubr.f32.gmra.mrb[0].mxu0 %v437
      %v538 = vpop.f32.mrb[0].mxu0
      %v539 = vadd.f32 %v460, %v538
      %v540 = vpop.f32.mrb[0].mxu0
      %541 = vmatprep.mubr.f32.mxu0 0.0
      %542 = vmatmul.mubr.f32.gmra.mrb[0].mxu0 %v438
      %v543 = vpop.f32.mrb[0].mxu0
      %v544 = vadd.f32 %v460, %v543
      %v545 = vpop.f32.mrb[0].mxu0
      %546 = vdwg.mxu0
      %v547 = vtanh.pop %v529
      %v548 = vtanh.pop %v534
      %v549 = vtanh.pop %v539
      %v550 = vtanh.pop %v544
      %v551 = vld [vmem:[%s311] sm:$0xff]
      %v552 = vld [vmem:[%s311 + $0x8] sm:$0xff]
      %v553 = vld [vmem:[%s311 + $0x10] sm:$0xff]
      %v554 = vld [vmem:[%s311 + $0x18] sm:$0xff]
      %v555 = vld [vmem:[%s317] sm:$0xff]
      %v556 = vld [vmem:[%s317 + $0x8] sm:$0xff]
      %v557 = vld [vmem:[%s317 + $0x10] sm:$0xff]
      %v558 = vld [vmem:[%s317 + $0x18] sm:$0xff]
      %v559 = vsub.f32 %v551, %v555
      %v560 = vsub.f32 %v552, %v556
      %v561 = vsub.f32 %v553, %v557
      %v562 = vsub.f32 %v554, %v558
      %v563 = vmul.f32 %v529, 2.0
      %v564 = vmul.f32 %v534, 2.0
      %v565 = vmul.f32 %v539, 2.0
      %v566 = vmul.f32 %v544, 2.0
      %v567 = vsub.f32 %v563, %v551
      %v568 = vsub.f32 %v564, %v552
      %v569 = vsub.f32 %v565, %v553
      %v570 = vsub.f32 %v566, %v554
      %v571 = vsub.f32 %v567, %v555
      %v572 = vsub.f32 %v568, %v556
      %v573 = vsub.f32 %v569, %v557
      %v574 = vsub.f32 %v570, %v558
      %v575 = vmul.f32 %v559, %v571
      %v576 = vmul.f32 %v560, %v572
      %v577 = vmul.f32 %v561, %v573
      %v578 = vmul.f32 %v562, %v574
      %v579 = vsub.f32 0.0, %v547
      %v580 = vsub.f32 0.0, %v548
      %v581 = vsub.f32 0.0, %v549
      %v582 = vsub.f32 0.0, %v550
      %v583 = vmul.f32 %v579, 1.442695
      %v584 = vpow.pop %v583
      %v585 = vmul.f32 %v580, 1.442695
      %v586 = vpow.pop %v585
      %v587 = vmul.f32 %v581, 1.442695
      %v588 = vpow.pop %v587
      %v589 = vmul.f32 %v582, 1.442695
      %v590 = vpow.pop %v589
      %595 = vrot.lane.b32.xlu0 %v584, 64
      %v596 = vpop.permute.xlu0 %595
      %597 = vrot.lane.b32.xlu0 %v586, 64
      %v598 = vpop.permute.xlu0 %597
      %599 = vrot.lane.b32.xlu0 %v588, 64
      %v600 = vpop.permute.xlu0 %599
      %601 = vrot.lane.b32.xlu0 %v590, 64
      %v602 = vpop.permute.xlu0 %601
      %v607 = vmul.f32 %v575, %v596
      %v608 = vmul.f32 %v576, %v598
      %v609 = vmul.f32 %v577, %v600
      %v610 = vmul.f32 %v578, %v602
      %v611 = vlaneseq
      %v612 = vshrl.u32 %v611, 7
      %v613 = vadd.s32 %v612, 8
      %v614 = vadd.s32 %v612, 16
      %v615 = vadd.s32 %v612, 24
      %s616 = smul.u32 %s18, 32
      %v617 = vstv %s616
      %v618 = vadd.s32 %v617, %v612
      %v619 = vadd.s32 %v617, %v613
      %v620 = vadd.s32 %v617, %v614
      %v621 = vadd.s32 %v617, %v615
      %vm622 = vcmp.lt.s32.totalorder %v618, 63
      %vm623 = vcmp.lt.s32.totalorder %v619, 63
      %vm624 = vcmp.lt.s32.totalorder %v620, 63
      %vm625 = vcmp.lt.s32.totalorder %v621, 63
      %v626 = vsel %vm622, %v607, 0.0
      %v627 = vsel %vm623, %v608, 0.0
      %v628 = vsel %vm624, %v609, 0.0
      %v629 = vsel %vm625, %v610, 0.0
      %vm630 = vcmask 523264
      %v631 = vsel %vm630, %v626, 0.0
      %v632 = vsel %vm630, %v627, 0.0
      %v633 = vadd.f32 %v631, %v632
      %v634 = vsel %vm630, %v628, 0.0
      %v635 = vadd.f32 %v633, %v634
      %v636 = vsel %vm630, %v629, 0.0
      %v637 = vadd.f32 %v635, %v636
      %638 = vadd.xlane.f32.xlu0 %v637
      %v639 = vpop.xlane.xlu0 %638
      %v640 = vrot.slane %v639, 4
      %v641 = vadd.f32 %v639, %v640
      %v642 = vrot.slane %v641, 2
      %v643 = vadd.f32 %v641, %v642
      %v644 = vrot.slane %v643, 1
      %v645 = vadd.f32 %v643, %v644
      %s646 = vtos %v645
      %v647 = vstv %s646
      %648 = vst [vmem:[%s322] sm:$0xff] %v647
      %p649 = scmp.lt.s32.totalorder %s18, 1
      %s650 = scalar_select %p649, %s18, 1
      %s651 = smul.addr %s650, 8
      %s652 = scalar_lea.vmem %s7, %s651
      // Predicated region
      $region49: #{club_sample_forward.1} parent=47 // pred_check
        %p653 = pneg %p198
      $region50: #{club_sample_forward.1} parent=47 // pred_check_branch
        %655 = sbr.rel (%p653) target = $region52
      $region51: #{club_sample_forward.1} parent=47 // pred_region
        _
      $region52: #{club_sample_forward.1} parent=47 // pred_fallthru
        _
    $region48: #{club_sample_forward.1} parent=5 // pred_fallthru
      _
    %p656 = scmp.le.s32.totalorder 2, %s13
    // Predicated region
    $region53: #{club_sample_forward.1} parent=5 // pred_check
      %p657 = pneg %p656
    $region54: #{club_sample_forward.1} parent=5 // pred_check_branch
      %659 = sbr.rel (%p657) target = $region56
    $region55: #{club_sample_forward.1} parent=5 // pred_region
      %s660 = ssub.s32 %s13, 2
      // Predicated region
      $region57: #{club_sample_forward.1} parent=55 // pred_check
        %p661 = pneg %p204
      $region58: #{club_sample_forward.1} parent=55 // pred_check_branch
        %663 = sbr.rel (%p661) target = $region60
      $region59: #{club_sample_forward.1} parent=55 // pred_region
        %p664 = scmp.lt.s32.totalorder %s19, 1
        %s665 = scalar_select %p664, %s19, 1
        %s666 = smul.addr %s665, 8
        %s667 = scalar_lea.vmem %s7, %s666
      $region60: #{club_sample_forward.1} parent=55 // pred_fallthru
        _
    $region56: #{club_sample_forward.1} parent=5 // pred_fallthru
      _
  $region6: #{club_sample_forward.1} parent=0 // loop_footer
    %s17 = sadd.s32 1, %s13
  $region7: #{club_sample_forward.1} parent=0 // loop_footer_branch
    %12 = sbr.rel target = $region3
  $region8: #{club_sample_forward.1} parent=0 // loop_exit
    _

</llo_original>
